<compile_context>
chip_gen: v5e
topology: v5e:2x2
jax: 0.10.0
libtpu: 0.0.40
codegen_flags: <defaults>
</compile_context>

<pallas_src>
import math

import jax
import jax.numpy as jnp
from jax.experimental import pallas as pl
from jax.experimental.pallas import tpu as pltpu


def _round_up(x, m):
    return ((x + m - 1) // m) * m


# ---------------------------------------------------------------------------
# Kernels
# ---------------------------------------------------------------------------
def ffn_kernel_resident(x_ref, w1_ref, b1_ref, w2_ref, b2_ref, o_ref):
    """Whole FFN for one (tm, E) token tile; W1/W2 fully resident in VMEM."""
    h = jnp.dot(x_ref[...], w1_ref[...], preferred_element_type=jnp.float32)
    h = jnp.maximum(h + b1_ref[...], 0.0)
    out = jnp.dot(h.astype(w2_ref.dtype), w2_ref[...],
                  preferred_element_type=jnp.float32)
    # TODO(synk): Dropout — identity in eval/inference; training-mode dropout
    # would use pltpu.prng_seed + pltpu.stateful_bernoulli here.
    o_ref[...] = (out + b2_ref[...]).astype(o_ref.dtype)


def ffn_kernel_streamed(x_ref, w1_ref, b1_ref, w2_ref, b2_ref, o_ref, acc_ref):
    """One (tm, E) token tile x one th-wide hidden chunk (reduction axis 1)."""
    k = pl.program_id(1)

    @pl.when(k == 0)
    def _init():
        acc_ref[...] = jnp.zeros_like(acc_ref)

    h = jnp.dot(x_ref[...], w1_ref[...], preferred_element_type=jnp.float32)
    h = jnp.maximum(h + b1_ref[...], 0.0)
    acc_ref[...] += jnp.dot(h.astype(w2_ref.dtype), w2_ref[...],
                            preferred_element_type=jnp.float32)

    @pl.when(k == pl.num_programs(1) - 1)
    def _finalize():
        o_ref[...] = (acc_ref[...] + b2_ref[...]).astype(o_ref.dtype)


# ---------------------------------------------------------------------------
# VMEM budgeting
# ---------------------------------------------------------------------------
def _vmem_budget_bytes():
    """Generation-aware budget: capacity minus headroom for Mosaic scratch."""
    cap = 64 * 2**20
    try:
        cap = int(pltpu.get_tpu_info().vmem_capacity_bytes)
    except Exception:
        pass
    # ~52 MiB on v7x (64 MiB/TC), ~108 MiB on v5e/v6e (128 MiB).
    return int(min(cap - 12 * 2**20, int(cap * 0.85)))


def _resident_vmem(tm, E, H, cb, ob):
    return (2 * tm * E * cb          # x tile (double-buffered)
            + 2 * E * H * cb         # W1 (buffer pair, DMA'd once)
            + 2 * H * 4              # b1 (f32)
            + 2 * H * E * cb         # W2
            + 2 * E * 4              # b2 (f32)
            + 2 * tm * E * ob        # out tile
            + tm * H * 4             # h intermediate (f32)
            + tm * H * cb)           # h cast for second matmul


def _streamed_vmem(tm, th, E, H, cb, ob):
    return (2 * tm * E * cb
            + 2 * E * th * cb
            + 2 * th * 4
            + 2 * th * E * cb
            + 2 * E * 4
            + 2 * tm * E * ob
            + tm * E * 4             # f32 accumulator scratch
            + tm * th * 4            # h intermediate (f32)
            + tm * th * cb)


# ---------------------------------------------------------------------------
# Wrapper
# ---------------------------------------------------------------------------
def feed_forward(x, w1, b1, w2, b2, *, compute_dtype=jnp.bfloat16,
                 force_streaming=False, tm=None, th=None,
                 vmem_budget_bytes=None):
    """Fused FeedForward matching the PyTorch module's forward (dropout = id)."""
    B, T, E = x.shape
    E_in, H = w1.shape
    assert E_in == E and w2.shape == (H, E)
    M = B * T
    out_dtype = x.dtype
    cb = jnp.dtype(compute_dtype).itemsize
    ob = jnp.dtype(out_dtype).itemsize

    budget = vmem_budget_bytes if vmem_budget_bytes else _vmem_budget_bytes()

    # ---- lane-dense padding of E and H (zero pad: math stays exact) --------
    E_pad = _round_up(E, 128)
    H_pad = _round_up(H, 128)

    # ---- token-tile candidates: prefer large 256-aligned tiles so the
    #      2x256^2 MXU (v6e/v7x) is filled and weight traffic is amortized ----
    if tm is not None:
        tm_cands = [tm]
    elif M >= 512:
        tm_cands = [512, 256, 128]
    elif M >= 256:
        tm_cands = [256, 128]
    elif M >= 128:
        tm_cands = [128]
    else:
        tm_cands = [_round_up(M, 8)]

    # ---- plan selection: resident fast path, else streamed reduction -------
    plan = None
    if not force_streaming:
        for tm_c in tm_cands:
            if _resident_vmem(tm_c, E_pad, H_pad, cb, ob) <= budget:
                plan = ("resident", tm_c, H_pad)
                break
    if plan is None:
        if th is not None:
            th_cands = [th]
        else:
            th_cands = [t for t in (1024, 768, 512, 256, 128)
                        if t <= H_pad and H_pad % t == 0] or [128]
        for tm_c in tm_cands:
            for th_c in th_cands:
                if _streamed_vmem(tm_c, th_c, E_pad, H_pad, cb, ob) <= budget:
                    plan = ("streamed", tm_c, th_c)
                    break
            if plan is not None:
                break
        if plan is None:           # last resort: smallest tiles
            plan = ("streamed", tm_cands[-1], th_cands[-1])

    mode, tm_sel, th_sel = plan
    M_pad = _round_up(M, tm_sel)
    n_m = M_pad // tm_sel

    # ---- operand prep: bf16/f32 matmul inputs, f32 biases, zero padding ----
    x2 = x.reshape(M, E).astype(compute_dtype)
    x2 = jnp.pad(x2, ((0, M_pad - M), (0, E_pad - E)))
    w1c = jnp.pad(w1.astype(compute_dtype), ((0, E_pad - E), (0, H_pad - H)))
    w2c = jnp.pad(w2.astype(compute_dtype), ((0, H_pad - H), (0, E_pad - E)))
    b1f = jnp.pad(b1.astype(jnp.float32), ((0, H_pad - H),)).reshape(1, H_pad)
    b2f = jnp.pad(b2.astype(jnp.float32), ((0, E_pad - E),)).reshape(1, E_pad)

    if mode == "resident":
        need = _resident_vmem(tm_sel, E_pad, H_pad, cb, ob)
        grid = (n_m,)
        weight_bytes = (E_pad * H_pad + H_pad * E_pad) * cb      # streamed once
        in_specs = [
            pl.BlockSpec((tm_sel, E_pad), lambda i: (i, 0)),     # x token tile
            pl.BlockSpec((E_pad, H_pad), lambda i: (0, 0)),      # W1 resident
            pl.BlockSpec((1, H_pad), lambda i: (0, 0)),          # b1
            pl.BlockSpec((H_pad, E_pad), lambda i: (0, 0)),      # W2 resident
            pl.BlockSpec((1, E_pad), lambda i: (0, 0)),          # b2
        ]
        out_specs = pl.BlockSpec((tm_sel, E_pad), lambda i: (i, 0))
        scratch_shapes = []
        kernel = ffn_kernel_resident
        dim_sem = ("parallel",)
    else:
        need = _streamed_vmem(tm_sel, th_sel, E_pad, H_pad, cb, ob)
        n_k = H_pad // th_sel
        grid = (n_m, n_k)
        weight_bytes = n_m * (E_pad * H_pad + H_pad * E_pad) * cb  # per token tile
        in_specs = [
            pl.BlockSpec((tm_sel, E_pad), lambda i, k: (i, 0)),  # x token tile
            pl.BlockSpec((E_pad, th_sel), lambda i, k: (0, k)),  # W1 hidden chunk
            pl.BlockSpec((1, th_sel), lambda i, k: (0, k)),      # b1 hidden chunk
            pl.BlockSpec((th_sel, E_pad), lambda i, k: (k, 0)),  # W2 hidden chunk
            pl.BlockSpec((1, E_pad), lambda i, k: (0, 0)),       # b2
        ]
        out_specs = pl.BlockSpec((tm_sel, E_pad), lambda i, k: (i, 0))
        scratch_shapes = [pltpu.VMEM((tm_sel, E_pad), jnp.float32)]
        kernel = ffn_kernel_streamed
        dim_sem = ("parallel", "arbitrary")

    vmem_limit = int(min(budget, max(2 * need, 32 * 2**20)))
    vmem_limit = max(vmem_limit, need + (2 << 20))
    cost = pl.CostEstimate(
        flops=4 * M_pad * E_pad * H_pad,
        transcendentals=0,
        bytes_accessed=int(M_pad * E_pad * cb + M_pad * E_pad * ob
                           + weight_bytes + H_pad * 4 + E_pad * 4),
    )

    # TODO(synk): for decode-like shapes (n_m == 1) only one v7x TensorCore is
    # used; a leading size-2 grid axis splitting H across cores could recover it.
    out = pl.pallas_call(
        kernel,
        out_shape=jax.ShapeDtypeStruct((M_pad, E_pad), out_dtype),
        grid_spec=pltpu.PrefetchScalarGridSpec(
            num_scalar_prefetch=0,
            grid=grid,
            in_specs=in_specs,
            out_specs=out_specs,
            scratch_shapes=scratch_shapes,
        ),
        compiler_params=pltpu.CompilerParams(
            dimension_semantics=dim_sem,
            vmem_limit_bytes=vmem_limit),
        cost_estimate=cost,
    )(x2, w1c, b1f, w2c, b2f)
    return out[:M, :E].reshape(B, T, E)


# ---------------------------------------------------------------------------
# Params / reference / tests
# ---------------------------------------------------------------------------
def make_params(key, n_embed):
    """nn.Linear-style U(-1/sqrt(fan_in), 1/sqrt(fan_in)) init."""
    hidden = 4 * n_embed
    k1, k2, k3, k4 = jax.random.split(key, 4)
    lim1 = 1.0 / math.sqrt(n_embed)
    lim2 = 1.0 / math.sqrt(hidden)
    w1 = jax.random.uniform(k1, (n_embed, hidden), jnp.float32, -lim1, lim1)
    b1 = jax.random.uniform(k2, (hidden,), jnp.float32, -lim1, lim1)
    w2 = jax.random.uniform(k3, (hidden, n_embed), jnp.float32, -lim2, lim2)
    b2 = jax.random.uniform(k4, (n_embed,), jnp.float32, -lim2, lim2)
    return w1, b1, w2, b2


def _ref(x, w1, b1, w2, b2):
    return jnp.maximum(x @ w1 + b1, 0.0) @ w2 + b2


if __name__ == "__main__":
    key = jax.random.PRNGKey(0)

    # Case 1: toy config, pure-f32 path, resident-weights plan (tight tol).
    n_embed, batch, seq = 32, 2, 8
    kx, kp, key = jax.random.split(key, 3)
    x = jax.random.normal(kx, (batch, seq, n_embed), jnp.float32)
    w1, b1, w2, b2 = make_params(kp, n_embed)
    out = jax.block_until_ready(
        feed_forward(x, w1, b1, w2, b2, compute_dtype=jnp.float32))
    ref = _ref(x, w1, b1, w2, b2)
    assert out.shape == (batch, seq, n_embed)
    assert jnp.allclose(out, ref, atol=1e-5, rtol=1e-5), "f32 mismatch"

    # Case 2: bf16 MXU operands + f32 accumulation (v6e/v7x-preferred path).
    out_bf16 = jax.block_until_ready(
        feed_forward(x, w1, b1, w2, b2, compute_dtype=jnp.bfloat16))
    assert jnp.allclose(out_bf16, ref, atol=5e-2, rtol=5e-2), "bf16 mismatch"

    # Case 3: ragged M, E and H, exercising the zero-padding paths.
    n_embed2, batch2, seq2 = 48, 1, 10   # M=10 (pad->16), E=48 (pad->128), H=192 (pad->256)
    kx2, kp2, key = jax.random.split(key, 3)
    x2 = jax.random.normal(kx2, (batch2, seq2, n_embed2), jnp.float32)
    p2 = make_params(kp2, n_embed2)
    out2 = jax.block_until_ready(
        feed_forward(x2, *p2, compute_dtype=jnp.float32))
    ref2 = _ref(x2, *p2)
    assert out2.shape == (batch2, seq2, n_embed2)
    assert jnp.allclose(out2, ref2, atol=1e-4, rtol=1e-4), "ragged mismatch"

    # Case 4: force the streamed-reduction plan (multi-chunk H accumulation).
    n_embed3, batch3, seq3 = 64, 2, 16   # H=256 -> H_pad=256, th=128 -> 2 k-steps
    kx3, kp3 = jax.random.split(key)
    x3 = jax.random.normal(kx3, (batch3, seq3, n_embed3), jnp.float32)
    p3 = make_params(kp3, n_embed3)
    out3 = jax.block_until_ready(
        feed_forward(x3, *p3, compute_dtype=jnp.float32,
                     force_streaming=True, th=128))
    ref3 = _ref(x3, *p3)
    assert out3.shape == (batch3, seq3, n_embed3)
    assert jnp.allclose(out3, ref3, atol=1e-4, rtol=1e-4), "streamed mismatch"

    print("KERNEL_OK")
</pallas_src>

<mosaic_0001>
module attributes {stable_mosaic.version = 11 : i64} {
  func.func @ffn_kernel_resident(%arg0: i32, %arg1: memref<16x128xf32, #tpu.memory_space<vmem>>, %arg2: memref<128x128xf32, #tpu.memory_space<vmem>>, %arg3: memref<1x128xf32, #tpu.memory_space<vmem>>, %arg4: memref<128x128xf32, #tpu.memory_space<vmem>>, %arg5: memref<1x128xf32, #tpu.memory_space<vmem>>, %arg6: memref<16x128xf32, #tpu.memory_space<vmem>>) attributes {dimension_semantics = [#tpu.dimension_semantics<parallel>], iteration_bounds = array<i64: 1>, scalar_prefetch = 0 : i64, scratch_operands = 0 : i64, tpu.core_type = #tpu.core_type<tc>, window_params = [{transform_indices = @transform_0, window_bounds = array<i64: 16, 128>}, {pipeline_mode = #tpu.pipeline_mode<synchronous>, transform_indices = @transform_1, window_bounds = array<i64: 128, 128>}, {pipeline_mode = #tpu.pipeline_mode<synchronous>, transform_indices = @transform_2, window_bounds = array<i64: 1, 128>}, {pipeline_mode = #tpu.pipeline_mode<synchronous>, transform_indices = @transform_3, window_bounds = array<i64: 128, 128>}, {pipeline_mode = #tpu.pipeline_mode<synchronous>, transform_indices = @transform_4, window_bounds = array<i64: 1, 128>}, {transform_indices = @transform_5, window_bounds = array<i64: 16, 128>}]} {
    %c0 = arith.constant 0 : index
    %c0_0 = arith.constant 0 : index
    %0 = vector.load %arg1[%c0, %c0_0] : memref<16x128xf32, #tpu.memory_space<vmem>>, vector<16x128xf32>
    %c0_1 = arith.constant 0 : index
    %c0_2 = arith.constant 0 : index
    %1 = vector.load %arg2[%c0_1, %c0_2] : memref<128x128xf32, #tpu.memory_space<vmem>>, vector<128x128xf32>
    %cst = arith.constant dense<0.000000e+00> : vector<16x128xf32>
    %2 = tpu.matmul %0, %1, %cst {dimension_numbers = #tpu.dot_dimension_numbers<[1], [0], [0], [1], [0, 0, 1, 1], [], []>} : vector<16x128xf32>, vector<128x128xf32>, vector<16x128xf32> -> vector<16x128xf32>
    %c0_3 = arith.constant 0 : index
    %c0_4 = arith.constant 0 : index
    %3 = vector.load %arg3[%c0_3, %c0_4] : memref<1x128xf32, #tpu.memory_space<vmem>>, vector<1x128xf32>
    %4 = vector.broadcast %3 : vector<1x128xf32> to vector<16x128xf32>
    %5 = arith.addf %2, %4 : vector<16x128xf32>
    %cst_5 = arith.constant 0.000000e+00 : f32
    %6 = vector.broadcast %cst_5 : f32 to vector<16x128xf32>
    %7 = arith.maximumf %5, %6 : vector<16x128xf32>
    %c0_6 = arith.constant 0 : index
    %c0_7 = arith.constant 0 : index
    %8 = vector.load %arg4[%c0_6, %c0_7] : memref<128x128xf32, #tpu.memory_space<vmem>>, vector<128x128xf32>
    %cst_8 = arith.constant dense<0.000000e+00> : vector<16x128xf32>
    %9 = tpu.matmul %7, %8, %cst_8 {dimension_numbers = #tpu.dot_dimension_numbers<[1], [0], [0], [1], [0, 0, 1, 1], [], []>} : vector<16x128xf32>, vector<128x128xf32>, vector<16x128xf32> -> vector<16x128xf32>
    %c0_9 = arith.constant 0 : index
    %c0_10 = arith.constant 0 : index
    %10 = vector.load %arg5[%c0_9, %c0_10] : memref<1x128xf32, #tpu.memory_space<vmem>>, vector<1x128xf32>
    %11 = vector.broadcast %10 : vector<1x128xf32> to vector<16x128xf32>
    %12 = arith.addf %9, %11 : vector<16x128xf32>
    %c0_11 = arith.constant 0 : index
    %c0_12 = arith.constant 0 : index
    %13 = vector.load %arg6[%c0_11, %c0_12] : memref<16x128xf32, #tpu.memory_space<vmem>>, vector<16x128xf32>
    tpu.vector_store %arg6[%c0_11, %c0_12], %12 {strides = array<i32>} : memref<16x128xf32, #tpu.memory_space<vmem>>, vector<16x128xf32>,
    return
  }
  func.func @transform_0(%arg0: i32) -> (i32, i32) {
    %c0_i32 = arith.constant 0 : i32
    %c0_i32_0 = arith.constant 0 : i32
    return %arg0, %c0_i32 : i32, i32
  }
  func.func @transform_1(%arg0: i32) -> (i32, i32) {
    %c0_i32 = arith.constant 0 : i32
    %c0_i32_0 = arith.constant 0 : i32
    %c0_i32_1 = arith.constant 0 : i32
    return %c0_i32, %c0_i32_0 : i32, i32
  }
  func.func @transform_2(%arg0: i32) -> (i32, i32) {
    %c0_i32 = arith.constant 0 : i32
    %c0_i32_0 = arith.constant 0 : i32
    %c0_i32_1 = arith.constant 0 : i32
    return %c0_i32, %c0_i32_0 : i32, i32
  }
  func.func @transform_3(%arg0: i32) -> (i32, i32) {
    %c0_i32 = arith.constant 0 : i32
    %c0_i32_0 = arith.constant 0 : i32
    %c0_i32_1 = arith.constant 0 : i32
    return %c0_i32, %c0_i32_0 : i32, i32
  }
  func.func @transform_4(%arg0: i32) -> (i32, i32) {
    %c0_i32 = arith.constant 0 : i32
    %c0_i32_0 = arith.constant 0 : i32
    %c0_i32_1 = arith.constant 0 : i32
    return %c0_i32, %c0_i32_0 : i32, i32
  }
  func.func @transform_5(%arg0: i32) -> (i32, i32) {
    %c0_i32 = arith.constant 0 : i32
    %c0_i32_0 = arith.constant 0 : i32
    return %arg0, %c0_i32 : i32, i32
  }
}

</mosaic_0001>

<llo_original>
// kernel: tpu_custom_call.1
$region0: #{tpu_custom_call.1}
  #allocation0 [shape = 'u32[]', space=smem, size = 0x4, offset = 0x4, fixed_abs, tag = 'smem constant byte address 0x4 - core index']
  #allocation1 [shape = 'u32[72,128]{1,0:T(1,128)}', space=vmem, size = 0x9000, scoped, tag = 'internal scratch']
  %s0 = inlined_call_operand.hbm [shape: f32[16,128], index: 0, kind: input, shape index: {}]
  %s1 = inlined_call_operand.hbm [shape: f32[128,128], index: 1, kind: input, shape index: {}]
  %s2 = inlined_call_operand.vmem [shape: f32[1,128], index: 2, kind: input, shape index: {}]
  %s3 = inlined_call_operand.hbm [shape: f32[128,128], index: 3, kind: input, shape index: {}]
  %s4 = inlined_call_operand.vmem [shape: f32[1,128], index: 4, kind: input, shape index: {}]
  %s5 = inlined_call_operand.hbm [shape: f32[16,128], index: 5, kind: output, shape index: {}]
  %s6 = sld [smem:[#allocation0]]
  $region42: #{tpu_custom_call.1} parent=0
    _
  %s8 = ssub.s32 1, %s6
  %s9 = scalar_select 0, %s8, %s6
  $region1: #{tpu_custom_call.1} parent=0
    #allocation2 [shape = 'u8[8192]{0}', space=vmem, size = 0x2000, scoped, tag = 'input window, operand 0, single buffered']
    #allocation3 [shape = 's32[1]{0}', space=sflag, size = 0x4, scoped, tag = 'scoped memory for tpu_custom_call.1']
    #allocation4 [shape = 's32[1]{0}', space=sflag, size = 0x4, scoped, tag = 'scoped memory for tpu_custom_call.1']
    #allocation5 [shape = 'u8[65536]{0}', space=vmem, size = 0x10000, scoped, tag = 'input window, operand 1, single buffered']
    #allocation6 [shape = 's32[1]{0}', space=sflag, size = 0x4, scoped, tag = 'scoped memory for tpu_custom_call.1']
    #allocation7 [shape = 'u8[65536]{0}', space=vmem, size = 0x10000, scoped, tag = 'input window, operand 3, single buffered']
    #allocation8 [shape = 'u8[8192]{0}', space=vmem, size = 0x2000, scoped, tag = 'output window, operand 0, single buffered']
    %10 = vsyncpa [#allocation3], 0
    %11 = vsyncpa [#allocation6], 0
    %12 = vsyncpa [#allocation4], 0
    // Predicated region
    $region2: #{tpu_custom_call.1} parent=1 // pred_check
      _
    $region3: #{tpu_custom_call.1} parent=1 // pred_check_branch
      %14 = sbr.rel (0) target = $region5
    $region4: #{tpu_custom_call.1} parent=1 // pred_region
      %16 = vsyncadd [#allocation3], 0
      %s17 = sshll.u32 %s0, 4
      %s18 = int_to_ptr.hbm [resolvable:$true] %s17
      %s19 = sshll.u32 [#allocation2], 4
      %s20 = int_to_ptr.vmem [resolvable:$true] %s19
      %25 = dma.hbm_to_vmem [thread:$0]  %s18, 256, %s20, [#allocation3], 128, 128, 8
    $region5: #{tpu_custom_call.1} parent=1 // pred_fallthru
      _
    // Predicated region
    $region6: #{tpu_custom_call.1} parent=1 // pred_check
      _
    $region7: #{tpu_custom_call.1} parent=1 // pred_check_branch
      %27 = sbr.rel (0) target = $region9
    $region8: #{tpu_custom_call.1} parent=1 // pred_region
      %29 = vsyncadd [#allocation6], 0
      %s30 = sshll.u32 %s1, 4
      %s31 = int_to_ptr.hbm [resolvable:$true] %s30
      %s32 = sshll.u32 [#allocation5], 4
      %s33 = int_to_ptr.vmem [resolvable:$true] %s32
      %38 = dma.hbm_to_vmem [thread:$0]  %s31, 2048, %s33, [#allocation6], 128, 128, 8
    $region9: #{tpu_custom_call.1} parent=1 // pred_fallthru
      _
    // Predicated region
    $region10: #{tpu_custom_call.1} parent=1 // pred_check
      _
    $region11: #{tpu_custom_call.1} parent=1 // pred_check_branch
      %40 = sbr.rel (0) target = $region13
    $region12: #{tpu_custom_call.1} parent=1 // pred_region
      _
    $region13: #{tpu_custom_call.1} parent=1 // pred_fallthru
      _
    // Predicated region
    $region14: #{tpu_custom_call.1} parent=1 // pred_check
      _
    $region15: #{tpu_custom_call.1} parent=1 // pred_check_branch
      %42 = sbr.rel (0) target = $region17
    $region16: #{tpu_custom_call.1} parent=1 // pred_region
      %44 = vsyncadd [#allocation6], 0
      %s45 = sshll.u32 %s3, 4
      %s46 = int_to_ptr.hbm [resolvable:$true] %s45
      %s47 = sshll.u32 [#allocation7], 4
      %s48 = int_to_ptr.vmem [resolvable:$true] %s47
      %53 = dma.hbm_to_vmem [thread:$0]  %s46, 2048, %s48, [#allocation6], 128, 128, 8
    $region17: #{tpu_custom_call.1} parent=1 // pred_fallthru
      _
    // Predicated region
    $region18: #{tpu_custom_call.1} parent=1 // pred_check
      _
    $region19: #{tpu_custom_call.1} parent=1 // pred_check_branch
      %55 = sbr.rel (0) target = $region21
    $region20: #{tpu_custom_call.1} parent=1 // pred_region
      _
    $region21: #{tpu_custom_call.1} parent=1 // pred_fallthru
      _
    // Predicated region
    $region22: #{tpu_custom_call.1} parent=1 // pred_check
      _
    $region23: #{tpu_custom_call.1} parent=1 // pred_check_branch
      %57 = sbr.rel (0) target = $region25
    $region24: #{tpu_custom_call.1} parent=1 // pred_region
      %59 = dma.done [#allocation3], 256
    $region25: #{tpu_custom_call.1} parent=1 // pred_fallthru
      _
    // Predicated region
    $region26: #{tpu_custom_call.1} parent=1 // pred_check
      _
    $region27: #{tpu_custom_call.1} parent=1 // pred_check_branch
      %61 = sbr.rel (0) target = $region29
    $region28: #{tpu_custom_call.1} parent=1 // pred_region
      %63 = dma.done [#allocation6], 2048
    $region29: #{tpu_custom_call.1} parent=1 // pred_fallthru
      _
    // Predicated region
    $region30: #{tpu_custom_call.1} parent=1 // pred_check
      _
    $region31: #{tpu_custom_call.1} parent=1 // pred_check_branch
      %65 = sbr.rel (0) target = $region33
    $region32: #{tpu_custom_call.1} parent=1 // pred_region
      %67 = dma.done [#allocation6], 2048
    $region33: #{tpu_custom_call.1} parent=1 // pred_fallthru
      _
    %v68 = vld [vmem:[#allocation2] sm:$0xff]
    %v69 = vld [vmem:[#allocation2 + $0x8] sm:$0xff]
    %v70 = vld [vmem:[#allocation5] sm:$0xff]
    %v71 = vld [vmem:[#allocation5 + $0x8] sm:$0xff]
    %v72 = vld [vmem:[#allocation5 + $0x10] sm:$0xff]
    %v73 = vld [vmem:[#allocation5 + $0x18] sm:$0xff]
    %v74 = vld [vmem:[#allocation5 + $0x20] sm:$0xff]
    %v75 = vld [vmem:[#allocation5 + $0x28] sm:$0xff]
    %v76 = vld [vmem:[#allocation5 + $0x30] sm:$0xff]
    %v77 = vld [vmem:[#allocation5 + $0x38] sm:$0xff]
    %v78 = vld [vmem:[#allocation5 + $0x40] sm:$0xff]
    %v79 = vld [vmem:[#allocation5 + $0x48] sm:$0xff]
    %v80 = vld [vmem:[#allocation5 + $0x50] sm:$0xff]
    %v81 = vld [vmem:[#allocation5 + $0x58] sm:$0xff]
    %v82 = vld [vmem:[#allocation5 + $0x60] sm:$0xff]
    %v83 = vld [vmem:[#allocation5 + $0x68] sm:$0xff]
    %v84 = vld [vmem:[#allocation5 + $0x70] sm:$0xff]
    %v85 = vld [vmem:[#allocation5 + $0x78] sm:$0xff]
    %v86 = vld [vmem:[%s2] sm:$0x1]
    %v88 = vperm.slane %v86, 0
    %90 = vmatpush.msra.mxu0 %v85
    %91 = vmatpush.msra.mxu0 %v84
    %92 = vmatpush.msra.mxu0 %v83
    %93 = vmatpush.msra.mxu0 %v82
    %94 = vmatpush.msra.mxu0 %v81
    %95 = vmatpush.msra.mxu0 %v80
    %96 = vmatpush.msra.mxu0 %v79
    %97 = vmatpush.msra.mxu0 %v78
    %98 = vmatpush.msra.mxu0 %v77
    %99 = vmatpush.msra.mxu0 %v76
    %100 = vmatpush.msra.mxu0 %v75
    %101 = vmatpush.msra.mxu0 %v74
    %102 = vmatpush.msra.mxu0 %v73
    %103 = vmatpush.msra.mxu0 %v72
    %104 = vmatpush.msra.mxu0 %v71
    %105 = vmatpush.msra.mxu0 %v70
    %106 = vmatmul.f32.gmra.mxu0 %v68
    %v107 = vpop.f32.mrf.mxu0
    %v108 = vadd.f32 %v88, %v107
    %109 = vmatmul.f32.gmra.mxu0 %v69
    %v110 = vpop.f32.mrf.mxu0
    %v111 = vadd.f32 %v88, %v110
    %112 = vdwg.mxu0
    %v113 = vmax.f32 %v108, 0.0
    %v114 = vmax.f32 %v111, 0.0
    %v115 = vld [vmem:[#allocation7] sm:$0xff]
    %v116 = vld [vmem:[#allocation7 + $0x8] sm:$0xff]
    %v117 = vld [vmem:[#allocation7 + $0x10] sm:$0xff]
    %v118 = vld [vmem:[#allocation7 + $0x18] sm:$0xff]
    %v119 = vld [vmem:[#allocation7 + $0x20] sm:$0xff]
    %v120 = vld [vmem:[#allocation7 + $0x28] sm:$0xff]
    %v121 = vld [vmem:[#allocation7 + $0x30] sm:$0xff]
    %v122 = vld [vmem:[#allocation7 + $0x38] sm:$0xff]
    %v123 = vld [vmem:[#allocation7 + $0x40] sm:$0xff]
    %v124 = vld [vmem:[#allocation7 + $0x48] sm:$0xff]
    %v125 = vld [vmem:[#allocation7 + $0x50] sm:$0xff]
    %v126 = vld [vmem:[#allocation7 + $0x58] sm:$0xff]
    %v127 = vld [vmem:[#allocation7 + $0x60] sm:$0xff]
    %v128 = vld [vmem:[#allocation7 + $0x68] sm:$0xff]
    %v129 = vld [vmem:[#allocation7 + $0x70] sm:$0xff]
    %v130 = vld [vmem:[#allocation7 + $0x78] sm:$0xff]
    %v131 = vld [vmem:[%s4] sm:$0x1]
    %v133 = vperm.slane %v131, 0
    %135 = vmatpush.msra.mxu0 %v130
    %136 = vmatpush.msra.mxu0 %v129
    %137 = vmatpush.msra.mxu0 %v128
    %138 = vmatpush.msra.mxu0 %v127
    %139 = vmatpush.msra.mxu0 %v126
    %140 = vmatpush.msra.mxu0 %v125
    %141 = vmatpush.msra.mxu0 %v124
    %142 = vmatpush.msra.mxu0 %v123
    %143 = vmatpush.msra.mxu0 %v122
    %144 = vmatpush.msra.mxu0 %v121
    %145 = vmatpush.msra.mxu0 %v120
    %146 = vmatpush.msra.mxu0 %v119
    %147 = vmatpush.msra.mxu0 %v118
    %148 = vmatpush.msra.mxu0 %v117
    %149 = vmatpush.msra.mxu0 %v116
    %150 = vmatpush.msra.mxu0 %v115
    %151 = vmatmul.f32.gmra.mxu0 %v113
    %v152 = vpop.f32.mrf.mxu0
    %v153 = vadd.f32 %v133, %v152
    %154 = vmatmul.f32.gmra.mxu0 %v114
    %v155 = vpop.f32.mrf.mxu0
    %v156 = vadd.f32 %v133, %v155
    %157 = vdwg.mxu0
    %158 = vst [vmem:[#allocation8] sm:$0xff] %v153
    %159 = vst [vmem:[#allocation8 + $0x8] sm:$0xff] %v156
    // Predicated region
    $region34: #{tpu_custom_call.1} parent=1 // pred_check
      _
    $region35: #{tpu_custom_call.1} parent=1 // pred_check_branch
      %161 = sbr.rel (0) target = $region37
    $region36: #{tpu_custom_call.1} parent=1 // pred_region
      %163 = vsyncadd [#allocation4], 0
      %s164 = sshll.u32 [#allocation8], 4
      %s165 = int_to_ptr.vmem [resolvable:$true] %s164
      %s166 = sshll.u32 %s5, 4
      %s167 = int_to_ptr.hbm [resolvable:$true] %s166
      %172 = dma.vmem_to_hbm [thread:$0]  %s165, 256, %s167, [#allocation4], 128, 128, 8
    $region37: #{tpu_custom_call.1} parent=1 // pred_fallthru
      _
    // Predicated region
    $region38: #{tpu_custom_call.1} parent=1 // pred_check
      _
    $region39: #{tpu_custom_call.1} parent=1 // pred_check_branch
      %174 = sbr.rel (0) target = $region41
    $region40: #{tpu_custom_call.1} parent=1 // pred_region
      %176 = dma.done [#allocation4], 256
    $region41: #{tpu_custom_call.1} parent=1 // pred_fallthru
      _
    %177 = vsyncpa [#allocation3], 1
    %178 = vsyncpa [#allocation6], 1
    %179 = vsyncpa [#allocation4], 1

</llo_original>
